<compile_context>
chip_gen: v7x
topology: tpu7x:2x2x1
jax: 0.10.0
libtpu: 0.0.40
codegen_flags: <defaults>
</compile_context>

<pallas_src>
import functools
import math

import jax
import jax.numpy as jnp
from jax import lax
from jax.experimental import pallas as pl
from jax.experimental.pallas import tpu as pltpu


def _round_up(v, m):
    return -(-v // m) * m


@functools.lru_cache(maxsize=None)
def _vmem_limit_bytes():
    """Generation-aware scoped-VMEM limit: ~half of physical, capped at 64 MiB
    (=> 64 MiB on 128-MiB v5e/v6e, 32 MiB on 64-MiB v7x)."""
    try:
        cap = int(getattr(pltpu.get_tpu_info(), "vmem_capacity_bytes",
                          128 * 1024 * 1024))
    except Exception:
        return 32 * 1024 * 1024
    return min(64 * 1024 * 1024, cap // 2)


# ---------------------------------------------------------------------------
# Kernel 1: conv + FiLM + ReLU + 2x2 maxpool, one batch tile per grid step
# ---------------------------------------------------------------------------
def _conv_film_relu_pool_kernel(x_ref, w_ref, b_ref, sc_ref, sh_ref, o_ref,
                                conv_sc, *, bt, H, W, KH, KW, taps_in_kernel):
    Ho, Wo = H - KH + 1, W - KW + 1
    Hp, Wp = Ho // 2, Wo // 2
    M = conv_sc.shape[0]          # bt*H*W (minus boundary pad on the tap path)
    Mv = M - W - 1                # rows that hold valid 2x2-window maxima

    # --- conv as one big-M matmul over the flat (image*row*col) axis --------
    if taps_in_kernel and KH * KW > 1:
        # Lane-aligned Cin: concatenate the taps in VMEM -> one im2col matmul.
        taps = [x_ref[pl.ds(i * W + j, M), :]
                for i in range(KH) for j in range(KW)]
        lhs = jnp.concatenate(taps, axis=1)
    else:
        # 1x1 kernel, or wrapper-side im2col (narrow Cin): block IS the lhs.
        lhs = x_ref[...]
    acc = jnp.dot(lhs, w_ref[...], preferred_element_type=jnp.float32)

    # --- FiLM + ReLU fused on the conv slab, one dense scratch store --------
    conv_sc[...] = jnp.maximum(sc_ref[...] * (acc + b_ref[...]) + sh_ref[...],
                               0.0)

    # --- 2x2 / stride-2 max pool: two whole-slab shifted maxes (in place) ---
    # horizontal neighbour max (shift by 1 flat position); reads are always at
    # offsets >= the written rows, so the in-place update is hazard free.
    conv_sc[pl.ds(0, M - 1), :] = jnp.maximum(conv_sc[pl.ds(0, M - 1), :],
                                              conv_sc[pl.ds(1, M - 1), :])
    # vertical neighbour max (shift by W flat positions)
    conv_sc[pl.ds(0, Mv), :] = jnp.maximum(conv_sc[pl.ds(0, Mv), :],
                                           conv_sc[pl.ds(W, Mv), :])

    # --- one strided subsample per pooled row, single dense block store -----
    def _row(start):
        if Wp == 1:
            return conv_sc[pl.ds(start, 1), :]
        return conv_sc[pl.ds(start, Wp, stride=2), :]

    imgs = []
    for b in range(bt):
        rows = [_row(b * H * W + 2 * hp * W) for hp in range(Hp)]
        imgs.append(rows[0] if Hp == 1 else jnp.concatenate(rows, axis=0))
    o_ref[...] = jnp.stack(imgs, axis=0).astype(o_ref.dtype)  # (bt, Hp*Wp, Cout)


def _pick_batch_tile(N, H, W, k_block, k_mm, c_out, budget):
    """Largest batch tile that is block-legal and fits the VMEM budget,
    preferring a >= 2-step grid (feeds both TensorCores on v7x)."""
    def legal(bt):
        return N % bt == 0 and (bt == N or (bt * H * W) % 8 == 0)

    def fits(bt):
        m = bt * H * W
        est = 4 * m * (2 * _round_up(k_block, 128)     # double-buffered input
                       + _round_up(max(k_mm, 1), 128)  # concat / im2col lhs
                       + 3 * _round_up(c_out, 128))    # conv slab + scratch + slack
        return est <= budget

    for bt in range(N // 2, 0, -1):
        if legal(bt) and fits(bt):
            return bt
    return N      # whole batch in one grid step (small N / awkward shapes)


def conv_film_relu_pool(x_nhwc, w_hwio, b, scale, shift):
    N, H, W, Cin = x_nhwc.shape
    KH, KW, _, Cout = w_hwio.shape
    Ho, Wo = H - KH + 1, W - KW + 1
    Hp, Wp = Ho // 2, Wo // 2

    x_flat = x_nhwc.reshape(N * H * W, Cin)           # free wrapper reshape
    w_mat = w_hwio.reshape(KH * KW * Cin, Cout)       # (i, j, cin) flatten order

    taps_in_kernel = (KH * KW == 1) or (Cin % 128 == 0)
    if taps_in_kernel:
        x_in, k_block = x_flat, Cin
    else:
        # Narrow Cin (conv1): im2col in the wrapper -> one lane-dense matmul.
        pad = (KH - 1) * W + (KW - 1)
        xp = jnp.pad(x_flat, ((0, pad), (0, 0)))
        cols = [xp[i * W + j: i * W + j + N * H * W, :]
                for i in range(KH) for j in range(KW)]
        x_in = jnp.concatenate(cols, axis=1)          # (N*H*W, KH*KW*Cin)
        k_block = KH * KW * Cin

    vmem = _vmem_limit_bytes()
    bt = _pick_batch_tile(N, H, W, k_block, KH * KW * Cin, Cout, vmem // 2)
    M = bt * H * W - ((KH - 1) * W + (KW - 1) if taps_in_kernel else 0)

    kernel = functools.partial(_conv_film_relu_pool_kernel, bt=bt, H=H, W=W,
                               KH=KH, KW=KW, taps_in_kernel=taps_in_kernel)
    out = pl.pallas_call(
        kernel,
        out_shape=jax.ShapeDtypeStruct((N, Hp * Wp, Cout), x_nhwc.dtype),
        grid_spec=pltpu.PrefetchScalarGridSpec(
            num_scalar_prefetch=0,
            grid=(N // bt,),
            in_specs=[
                pl.BlockSpec((bt * H * W, k_block), lambda i: (i, 0)),
                pl.BlockSpec((KH * KW * Cin, Cout), lambda i: (0, 0)),
                pl.BlockSpec((1, Cout), lambda i: (0, 0)),
                pl.BlockSpec((1, Cout), lambda i: (0, 0)),
                pl.BlockSpec((1, Cout), lambda i: (0, 0)),
            ],
            out_specs=pl.BlockSpec((bt, Hp * Wp, Cout), lambda i: (i, 0, 0)),
            scratch_shapes=[pltpu.VMEM((M, Cout), jnp.float32)],
        ),
        compiler_params=pltpu.CompilerParams(
            dimension_semantics=("parallel",),
            vmem_limit_bytes=vmem),
    )(x_in, w_mat, b, scale, shift)
    return out.reshape(N, Hp, Wp, Cout)               # free row-major reshape


# ---------------------------------------------------------------------------
# Kernel 2: fused FC stack  fc1 -> FiLM -> ReLU -> fc2 -> FiLM -> ReLU -> heads
#           (grid over fc2 output-feature tiles; heads matmul accumulated)
# ---------------------------------------------------------------------------
def _fc_stack_kernel(x_ref, w1_ref, b1_ref, sc1_ref, sh1_ref,
                     w2_ref, b2_ref, sc2_ref, sh2_ref, wh_ref, bh_ref,
                     y_ref, h1_sc, y_acc):
    j = pl.program_id(0)

    @pl.when(j == 0)
    def _():
        # fc1 (+ FiLM + ReLU) once; result kept resident in VMEM (bf16).
        h1 = jnp.dot(x_ref[...], w1_ref[...], preferred_element_type=jnp.float32)
        h1 = jnp.maximum(sc1_ref[...] * (h1 + b1_ref[...]) + sh1_ref[...], 0.0)
        h1_sc[...] = h1.astype(h1_sc.dtype)
        y_acc[...] = jnp.zeros_like(y_acc)

    # fc2 output-feature tile j (+ FiLM + ReLU) ...
    h2 = jnp.dot(h1_sc[...], w2_ref[...], preferred_element_type=jnp.float32)
    h2 = jnp.maximum(sc2_ref[...] * (h2 + b2_ref[...]) + sh2_ref[...], 0.0)
    # ... and the matching row tile of the fused task-heads matmul.
    y_acc[...] += jnp.dot(h2.astype(wh_ref.dtype), wh_ref[...],
                          preferred_element_type=jnp.float32)

    @pl.when(j == pl.num_programs(0) - 1)
    def _():
        y_ref[...] = (y_acc[...] + bh_ref[...]).astype(y_ref.dtype)


def fc_stack(x, w1, b1, w2, b2, wh, bh, scale, shift, *, tile_n=1024):
    N, Din = x.shape
    D1 = w1.shape[1]
    D2 = w2.shape[1]
    Hsum = wh.shape[1]
    tn = tile_n if D2 % tile_n == 0 else D2

    # bf16 weight / activation streams, f32 accumulation on the MXU.
    xb = x.astype(jnp.bfloat16)
    w1b = w1.astype(jnp.bfloat16)
    w2b = w2.astype(jnp.bfloat16)
    whb = wh.astype(jnp.bfloat16)

    return pl.pallas_call(
        _fc_stack_kernel,
        out_shape=jax.ShapeDtypeStruct((N, Hsum), jnp.float32),
        grid_spec=pltpu.PrefetchScalarGridSpec(
            num_scalar_prefetch=0,
            grid=(D2 // tn,),
            in_specs=[
                pl.BlockSpec((N, Din), lambda j: (0, 0)),    # x
                pl.BlockSpec((Din, D1), lambda j: (0, 0)),   # fc1 weight (resident)
                pl.BlockSpec((1, D1), lambda j: (0, 0)),     # fc1 bias
                pl.BlockSpec((1, D1), lambda j: (0, 0)),     # FiLM scale (fc1, full)
                pl.BlockSpec((1, D1), lambda j: (0, 0)),     # FiLM shift (fc1, full)
                pl.BlockSpec((D1, tn), lambda j: (0, j)),    # fc2 weight tile
                pl.BlockSpec((1, tn), lambda j: (0, j)),     # fc2 bias tile
                pl.BlockSpec((1, tn), lambda j: (0, j)),     # FiLM scale (fc2 tile)
                pl.BlockSpec((1, tn), lambda j: (0, j)),     # FiLM shift (fc2 tile)
                pl.BlockSpec((tn, Hsum), lambda j: (j, 0)),  # heads weight row tile
                pl.BlockSpec((1, Hsum), lambda j: (0, 0)),   # heads bias
            ],
            out_specs=pl.BlockSpec((N, Hsum), lambda j: (0, 0)),
            scratch_shapes=[pltpu.VMEM((N, D1), jnp.bfloat16),
                            pltpu.VMEM((N, Hsum), jnp.float32)],
        ),
        compiler_params=pltpu.CompilerParams(
            dimension_semantics=("arbitrary",),      # accumulator carried
            vmem_limit_bytes=_vmem_limit_bytes()),
    )(xb, w1b, b1, scale, shift, w2b, b2, scale, shift, whb, bh)


# ---------------------------------------------------------------------------
# Parameters (deterministic, torch-like U(-1/sqrt(fan_in), 1/sqrt(fan_in)))
# ---------------------------------------------------------------------------
def init_params(key, ncha, size, taskcla):
    ntasks = len(taskcla)
    k1, k2, k3 = size // 8, size // 10, 2
    s = size - k1 + 1; s //= 2
    s = s - k2 + 1;    s //= 2
    s = s - k3 + 1;    s //= 2

    keys = iter(jax.random.split(key, 32))

    def u(shape, fan_in):
        bound = 1.0 / math.sqrt(fan_in)
        return jax.random.uniform(next(keys), shape, jnp.float32, -bound, bound)

    p = {}
    p['conv1_w'] = u((k1, k1, ncha, 64), ncha * k1 * k1)
    p['conv1_b'] = u((1, 64), ncha * k1 * k1)
    p['conv2_w'] = u((k2, k2, 64, 128), 64 * k2 * k2)
    p['conv2_b'] = u((1, 128), 64 * k2 * k2)
    p['conv3_w'] = u((k3, k3, 128, 256), 128 * k3 * k3)
    p['conv3_b'] = u((1, 256), 128 * k3 * k3)
    fc_in = 256 * s * s
    p['fc1_w'] = u((fc_in, 2048), fc_in)
    p['fc1_b'] = u((1, 2048), fc_in)
    p['fc2_w'] = u((2048, 2048), 2048)
    p['fc2_b'] = u((1, 2048), 2048)
    for tt, n in taskcla:
        p[f'head{tt}_w'] = u((2048, n), 2048)
        p[f'head{tt}_b'] = u((1, n), 2048)
    # FiLM embeddings: init_film() -> scales = 1, shifts = 0.
    for name, dim in (('1', 64), ('2', 128), ('3', 256), ('4', 2048), ('5', 2048)):
        p['scale' + name] = jnp.ones((ntasks, dim), jnp.float32)
        p['shift' + name] = jnp.zeros((ntasks, dim), jnp.float32)
    return p


# ---------------------------------------------------------------------------
# Forward pass using the Pallas kernels
# ---------------------------------------------------------------------------
def net_forward(params, t, x_nchw, taskcla):
    x = jnp.transpose(x_nchw, (0, 2, 3, 1))            # NCHW -> NHWC
    sl = lambda name: params[name][t:t + 1]            # task-t FiLM row, (1, C)

    h = conv_film_relu_pool(x, params['conv1_w'], params['conv1_b'],
                            sl('scale1'), sl('shift1'))
    h = conv_film_relu_pool(h, params['conv2_w'], params['conv2_b'],
                            sl('scale2'), sl('shift2'))
    h = conv_film_relu_pool(h, params['conv3_w'], params['conv3_b'],
                            sl('scale3'), sl('shift3'))

    N = x.shape[0]
    h = jnp.transpose(h, (0, 3, 1, 2)).reshape(N, -1)  # torch NCHW flatten

    # Reference forward uses scale4/shift4 for BOTH fc1 and fc2; all task
    # heads are fused into the same kernel (concatenated) and split here.
    heads_w = jnp.concatenate([params[f'head{tt}_w'] for tt, _ in taskcla], axis=1)
    heads_b = jnp.concatenate([params[f'head{tt}_b'] for tt, _ in taskcla], axis=1)
    y_all = fc_stack(h, params['fc1_w'], params['fc1_b'],
                     params['fc2_w'], params['fc2_b'],
                     heads_w, heads_b, sl('scale4'), sl('shift4'))

    ys, off = [], 0
    for _, n in taskcla:
        ys.append(y_all[:, off:off + n])
        off += n
    return ys


# ---------------------------------------------------------------------------
# Pure-JAX reference for verification
# ---------------------------------------------------------------------------
def ref_forward(params, t, x_nchw, taskcla):
    x = jnp.transpose(x_nchw, (0, 2, 3, 1))

    def conv_block(h, w, b, sc, sh):
        c = lax.conv_general_dilated(h, w, (1, 1), 'VALID',
                                     dimension_numbers=('NHWC', 'HWIO', 'NHWC'),
                                     precision=lax.Precision.HIGHEST)
        c = sc[t][None, None, None, :] * (c + b[0][None, None, None, :]) \
            + sh[t][None, None, None, :]
        c = jnp.maximum(c, 0.0)
        return lax.reduce_window(c, -jnp.inf, lax.max,
                                 (1, 2, 2, 1), (1, 2, 2, 1), 'VALID')

    h = conv_block(x, params['conv1_w'], params['conv1_b'],
                   params['scale1'], params['shift1'])
    h = conv_block(h, params['conv2_w'], params['conv2_b'],
                   params['scale2'], params['shift2'])
    h = conv_block(h, params['conv3_w'], params['conv3_b'],
                   params['scale3'], params['shift3'])

    N = x.shape[0]
    h = jnp.transpose(h, (0, 3, 1, 2)).reshape(N, -1)

    def fc(h, w, b, sc, sh):
        z = jnp.dot(h, w, precision=lax.Precision.HIGHEST) + b[0]
        return jnp.maximum(sc[t] * z + sh[t], 0.0)

    h = fc(h, params['fc1_w'], params['fc1_b'], params['scale4'], params['shift4'])
    h = fc(h, params['fc2_w'], params['fc2_b'], params['scale4'], params['shift4'])

    ys = []
    for tt, n in taskcla:
        ys.append(jnp.dot(h, params[f'head{tt}_w'],
                          precision=lax.Precision.HIGHEST)
                  + params[f'head{tt}_b'][0])
    return ys


if __name__ == "__main__":
    ncha, size = 3, 16                      # inputsize = (3, 16, 16)
    taskcla = [(0, 5), (1, 7)]
    batch = 2
    t = 0

    params = init_params(jax.random.PRNGKey(0), ncha, size, taskcla)
    x = jax.random.normal(jax.random.PRNGKey(1), (batch, ncha, size, size),
                          jnp.float32)

    ys = net_forward(params, t, x, taskcla)
    ys = jax.block_until_ready(ys)

    ys_ref = ref_forward(params, t, x, taskcla)
    for y_k, y_r, (_, n) in zip(ys, ys_ref, taskcla):
        assert y_k.shape == (batch, n), y_k.shape
        assert jnp.allclose(y_k, y_r, rtol=2e-2, atol=2e-2), \
            float(jnp.max(jnp.abs(y_k - y_r)))

    print("KERNEL_OK")
</pallas_src>

<mosaic_0001>
module attributes {stable_mosaic.version = 11 : i64} {
  func.func @_conv_film_relu_pool_kernel(%arg0: i32, %arg1: memref<256x12xf32, #tpu.memory_space<vmem>>, %arg2: memref<12x64xf32, #tpu.memory_space<vmem>>, %arg3: memref<1x64xf32, #tpu.memory_space<vmem>>, %arg4: memref<1x64xf32, #tpu.memory_space<vmem>>, %arg5: memref<1x64xf32, #tpu.memory_space<vmem>>, %arg6: memref<1x49x64xf32, #tpu.memory_space<vmem>>, %arg7: memref<256x64xf32, #tpu.memory_space<vmem>>) attributes {dimension_semantics = [#tpu.dimension_semantics<parallel>], iteration_bounds = array<i64: 2>, scalar_prefetch = 0 : i64, scratch_operands = 1 : i64, tpu.core_type = #tpu.core_type<tc>, window_params = [{transform_indices = @transform_0, window_bounds = array<i64: 256, 12>}, {pipeline_mode = #tpu.pipeline_mode<synchronous>, transform_indices = @transform_1, window_bounds = array<i64: 12, 64>}, {pipeline_mode = #tpu.pipeline_mode<synchronous>, transform_indices = @transform_2, window_bounds = array<i64: 1, 64>}, {pipeline_mode = #tpu.pipeline_mode<synchronous>, transform_indices = @transform_3, window_bounds = array<i64: 1, 64>}, {pipeline_mode = #tpu.pipeline_mode<synchronous>, transform_indices = @transform_4, window_bounds = array<i64: 1, 64>}, {transform_indices = @transform_5, window_bounds = array<i64: 1, 49, 64>}]} {
    %c0 = arith.constant 0 : index
    %c0_0 = arith.constant 0 : index
    %0 = vector.load %arg1[%c0, %c0_0] : memref<256x12xf32, #tpu.memory_space<vmem>>, vector<256x12xf32>
    %c0_1 = arith.constant 0 : index
    %c0_2 = arith.constant 0 : index
    %1 = vector.load %arg2[%c0_1, %c0_2] : memref<12x64xf32, #tpu.memory_space<vmem>>, vector<12x64xf32>
    %cst = arith.constant dense<0.000000e+00> : vector<256x64xf32>
    %2 = tpu.matmul %0, %1, %cst {dimension_numbers = #tpu.dot_dimension_numbers<[1], [0], [0], [1], [0, 0, 1, 1], [], []>} : vector<256x12xf32>, vector<12x64xf32>, vector<256x64xf32> -> vector<256x64xf32>
    %c0_3 = arith.constant 0 : index
    %c0_4 = arith.constant 0 : index
    %3 = vector.load %arg4[%c0_3, %c0_4] : memref<1x64xf32, #tpu.memory_space<vmem>>, vector<1x64xf32>
    %c0_5 = arith.constant 0 : index
    %c0_6 = arith.constant 0 : index
    %4 = vector.load %arg3[%c0_5, %c0_6] : memref<1x64xf32, #tpu.memory_space<vmem>>, vector<1x64xf32>
    %5 = vector.broadcast %4 : vector<1x64xf32> to vector<256x64xf32>
    %6 = arith.addf %2, %5 : vector<256x64xf32>
    %7 = vector.broadcast %3 : vector<1x64xf32> to vector<256x64xf32>
    %8 = arith.mulf %7, %6 : vector<256x64xf32>
    %c0_7 = arith.constant 0 : index
    %c0_8 = arith.constant 0 : index
    %9 = vector.load %arg5[%c0_7, %c0_8] : memref<1x64xf32, #tpu.memory_space<vmem>>, vector<1x64xf32>
    %10 = vector.broadcast %9 : vector<1x64xf32> to vector<256x64xf32>
    %11 = arith.addf %8, %10 : vector<256x64xf32>
    %cst_9 = arith.constant 0.000000e+00 : f32
    %12 = vector.broadcast %cst_9 : f32 to vector<256x64xf32>
    %13 = arith.maximumf %11, %12 : vector<256x64xf32>
    %c0_10 = arith.constant 0 : index
    %c0_11 = arith.constant 0 : index
    %14 = vector.load %arg7[%c0_10, %c0_11] : memref<256x64xf32, #tpu.memory_space<vmem>>, vector<256x64xf32>
    tpu.vector_store %arg7[%c0_10, %c0_11], %13 {strides = array<i32>} : memref<256x64xf32, #tpu.memory_space<vmem>>, vector<256x64xf32>,
    %c0_12 = arith.constant 0 : index
    %c0_13 = arith.constant 0 : index
    %15 = vector.load %arg7[%c0_12, %c0_13] : memref<256x64xf32, #tpu.memory_space<vmem>>, vector<255x64xf32>
    %c1 = arith.constant 1 : index
    %c0_14 = arith.constant 0 : index
    %16 = vector.load %arg7[%c1, %c0_14] : memref<256x64xf32, #tpu.memory_space<vmem>>, vector<255x64xf32>
    %17 = arith.maximumf %15, %16 : vector<255x64xf32>
    %c0_15 = arith.constant 0 : index
    %c0_16 = arith.constant 0 : index
    %18 = vector.load %arg7[%c0_15, %c0_16] : memref<256x64xf32, #tpu.memory_space<vmem>>, vector<255x64xf32>
    tpu.vector_store %arg7[%c0_15, %c0_16], %17 {strides = array<i32>} : memref<256x64xf32, #tpu.memory_space<vmem>>, vector<255x64xf32>,
    %c0_17 = arith.constant 0 : index
    %c0_18 = arith.constant 0 : index
    %19 = vector.load %arg7[%c0_17, %c0_18] : memref<256x64xf32, #tpu.memory_space<vmem>>, vector<239x64xf32>
    %c16 = arith.constant 16 : index
    %c0_19 = arith.constant 0 : index
    %20 = vector.load %arg7[%c16, %c0_19] : memref<256x64xf32, #tpu.memory_space<vmem>>, vector<239x64xf32>
    %21 = arith.maximumf %19, %20 : vector<239x64xf32>
    %c0_20 = arith.constant 0 : index
    %c0_21 = arith.constant 0 : index
    %22 = vector.load %arg7[%c0_20, %c0_21] : memref<256x64xf32, #tpu.memory_space<vmem>>, vector<239x64xf32>
    tpu.vector_store %arg7[%c0_20, %c0_21], %21 {strides = array<i32>} : memref<256x64xf32, #tpu.memory_space<vmem>>, vector<239x64xf32>,
    %c0_22 = arith.constant 0 : index
    %c0_23 = arith.constant 0 : index
    %23 = tpu.strided_load %arg7[%c0_22, %c0_23] {strides = array<i32: 2, 1>} : memref<256x64xf32, #tpu.memory_space<vmem>>, vector<7x64xf32>
    %c32 = arith.constant 32 : index
    %c0_24 = arith.constant 0 : index
    %24 = tpu.strided_load %arg7[%c32, %c0_24] {strides = array<i32: 2, 1>} : memref<256x64xf32, #tpu.memory_space<vmem>>, vector<7x64xf32>
    %c64 = arith.constant 64 : index
    %c0_25 = arith.constant 0 : index
    %25 = tpu.strided_load %arg7[%c64, %c0_25] {strides = array<i32: 2, 1>} : memref<256x64xf32, #tpu.memory_space<vmem>>, vector<7x64xf32>
    %c96 = arith.constant 96 : index
    %c0_26 = arith.constant 0 : index
    %26 = tpu.strided_load %arg7[%c96, %c0_26] {strides = array<i32: 2, 1>} : memref<256x64xf32, #tpu.memory_space<vmem>>, vector<7x64xf32>
    %c128 = arith.constant 128 : index
    %c0_27 = arith.constant 0 : index
    %27 = tpu.strided_load %arg7[%c128, %c0_27] {strides = array<i32: 2, 1>} : memref<256x64xf32, #tpu.memory_space<vmem>>, vector<7x64xf32>
    %c160 = arith.constant 160 : index
    %c0_28 = arith.constant 0 : index
    %28 = tpu.strided_load %arg7[%c160, %c0_28] {strides = array<i32: 2, 1>} : memref<256x64xf32, #tpu.memory_space<vmem>>, vector<7x64xf32>
    %c192 = arith.constant 192 : index
    %c0_29 = arith.constant 0 : index
    %29 = tpu.strided_load %arg7[%c192, %c0_29] {strides = array<i32: 2, 1>} : memref<256x64xf32, #tpu.memory_space<vmem>>, vector<7x64xf32>
    %30 = tpu.concatenate %23, %24, %25, %26, %27, %28, %29 in 0 : vector<7x64xf32>, vector<7x64xf32>, vector<7x64xf32>, vector<7x64xf32>, vector<7x64xf32>, vector<7x64xf32>, vector<7x64xf32> -> vector<49x64xf32>
    %31 = vector.shape_cast %30 : vector<49x64xf32> to vector<1x49x64xf32>
    %c0_30 = arith.constant 0 : index
    %c0_31 = arith.constant 0 : index
    %c0_32 = arith.constant 0 : index
    %32 = vector.load %arg6[%c0_30, %c0_31, %c0_32] : memref<1x49x64xf32, #tpu.memory_space<vmem>>, vector<1x49x64xf32>
    tpu.vector_store %arg6[%c0_30, %c0_31, %c0_32], %31 {strides = array<i32>} : memref<1x49x64xf32, #tpu.memory_space<vmem>>, vector<1x49x64xf32>,
    return
  }
  func.func @transform_0(%arg0: i32) -> (i32, i32) {
    %c0_i32 = arith.constant 0 : i32
    %c0_i32_0 = arith.constant 0 : i32
    return %arg0, %c0_i32 : i32, i32
  }
  func.func @transform_1(%arg0: i32) -> (i32, i32) {
    %c0_i32 = arith.constant 0 : i32
    %c0_i32_0 = arith.constant 0 : i32
    %c0_i32_1 = arith.constant 0 : i32
    return %c0_i32, %c0_i32_0 : i32, i32
  }
  func.func @transform_2(%arg0: i32) -> (i32, i32) {
    %c0_i32 = arith.constant 0 : i32
    %c0_i32_0 = arith.constant 0 : i32
    %c0_i32_1 = arith.constant 0 : i32
    return %c0_i32, %c0_i32_0 : i32, i32
  }
  func.func @transform_3(%arg0: i32) -> (i32, i32) {
    %c0_i32 = arith.constant 0 : i32
    %c0_i32_0 = arith.constant 0 : i32
    %c0_i32_1 = arith.constant 0 : i32
    return %c0_i32, %c0_i32_0 : i32, i32
  }
  func.func @transform_4(%arg0: i32) -> (i32, i32) {
    %c0_i32 = arith.constant 0 : i32
    %c0_i32_0 = arith.constant 0 : i32
    %c0_i32_1 = arith.constant 0 : i32
    return %c0_i32, %c0_i32_0 : i32, i32
  }
  func.func @transform_5(%arg0: i32) -> (i32, i32, i32) {
    %c0_i32 = arith.constant 0 : i32
    %c0_i32_0 = arith.constant 0 : i32
    %c0_i32_1 = arith.constant 0 : i32
    return %arg0, %c0_i32, %c0_i32_0 : i32, i32, i32
  }
}

</mosaic_0001>

<llo_original>
// kernel: tpu_custom_call.1
$region0: #{tpu_custom_call.1}
  #allocation0 [shape = 'u32[]', space=smem, size = 0x4, offset = 0x4, fixed_abs, tag = 'smem constant byte address 0x4 - core index']
  #allocation1 [shape = 'u32[144,128]{1,0:T(1,128)}', space=vmem, size = 0x12000, scoped, tag = 'internal scratch']
  #allocation2 [shape = 'f32[256,64]{1,0:T(8,128)}', space=vmem, size = 0x20000, scoped, tag = 'scratch operand']
  %s0 = inlined_call_operand.vmem [shape: f32[512,12], index: 0, kind: input, shape index: {}]
  %s1 = inlined_call_operand.vmem [shape: f32[12,64], index: 1, kind: input, shape index: {}]
  %s2 = inlined_call_operand.vmem [shape: f32[1,64], index: 2, kind: input, shape index: {}]
  %s3 = inlined_call_operand.vmem [shape: f32[1,64], index: 3, kind: input, shape index: {}]
  %s4 = inlined_call_operand.vmem [shape: f32[1,64], index: 4, kind: input, shape index: {}]
  %s5 = inlined_call_operand.vmem [shape: f32[2,49,64], index: 5, kind: output, shape index: {}]
  %s6 = sld [smem:[#allocation0]]
  $region53: #{tpu_custom_call.1} parent=0
    _
  %s8 = ssub.s32 1, %s6
  %s9 = scalar_select 0, %s8, %s6
  loop: start=0, step=1, limit=4
  $region2: #{tpu_custom_call.1} parent=0 // loop_pre_header
    _
  $region3: #{tpu_custom_call.1} parent=0 // loop_header
    %s11 = sphi 0, %s15
    %p12 = scmp.ge.s32.totalorder %s11, 4
    %s21 = sphi 0, %s23
    %s24 = sphi 0, %s21
    %s25 = sphi 0, %s24
    %s41 = sphi 0, %s25
    %s45 = sphi 0, %s45
    %s47 = sphi 0, %s45
    %s48 = sphi 0, %s47
    %s62 = sphi 0, %s48
    %s66 = sphi 0, %s66
    %s68 = sphi 0, %s66
    %s69 = sphi 0, %s68
    %s83 = sphi 0, %s69
    %s87 = sphi 0, %s87
    %s89 = sphi 0, %s87
    %s90 = sphi 0, %s89
    %s104 = sphi 0, %s90
    %s108 = sphi 0, %s108
    %s110 = sphi 0, %s108
    %s111 = sphi 0, %s110
    %s125 = sphi 0, %s111
    %s131 = sphi 0, %s133
    %s134 = sphi 0, %s131
    %s135 = sphi 0, %s134
    %s151 = sphi 0, %s135
  $region4: #{tpu_custom_call.1} parent=0 // loop_header_branch
    %14 = sbr.rel (%p12) target = $region8
  $region5: #{tpu_custom_call.1} parent=0 // loop_body
    %s16 = ssub.s32 %s11, 1
    %s17 = ssub.s32 %s11, 2
    %s18 = sadd.s32 %s11, 1
    %s19 = ssub.s32 %s11, %s18
    %p20 = scmp.eq.s32.totalorder %s19, 0
    %s22 = sadd.s32 %s21, 1
    %s23 = scalar_select %p20, %s21, %s22
    %p26 = pneg %p20
    %p27 = scmp.eq.s32.totalorder %s11, 1
    %p28 = por %p26, %p27
    %p29 = scmp.ne.s32.totalorder %s21, %s24
    %p30 = scmp.eq.s32.totalorder %s11, 0
    %p31 = por %p29, %p30
    %p32 = scmp.ne.s32.totalorder %s21, %s24
    %p33 = scmp.eq.s32.totalorder %s16, 1
    %p34 = por %p32, %p33
    %p35 = scmp.ne.s32.totalorder %s24, %s25
    %p36 = scmp.eq.s32.totalorder %s16, 0
    %p37 = por %p35, %p36
    %p38 = scmp.ne.s32.totalorder %s24, %s25
    %p39 = scmp.eq.s32.totalorder %s17, 1
    %p40 = por %p38, %p39
    %p42 = scmp.ne.s32.totalorder %s25, %s41
    %p43 = scmp.eq.s32.totalorder %s17, 0
    %p44 = por %p42, %p43
    %s46 = sadd.s32 %s45, 1
    %p49 = scmp.eq.s32.totalorder %s11, 1
    %p50 = scmp.ne.s32.totalorder %s45, %s47
    %p51 = scmp.eq.s32.totalorder %s11, 0
    %p52 = por %p50, %p51
    %p53 = scmp.ne.s32.totalorder %s45, %s47
    %p54 = scmp.eq.s32.totalorder %s16, 1
    %p55 = por %p53, %p54
    %p56 = scmp.ne.s32.totalorder %s47, %s48
    %p57 = scmp.eq.s32.totalorder %s16, 0
    %p58 = por %p56, %p57
    %p59 = scmp.ne.s32.totalorder %s47, %s48
    %p60 = scmp.eq.s32.totalorder %s17, 1
    %p61 = por %p59, %p60
    %p63 = scmp.ne.s32.totalorder %s48, %s62
    %p64 = scmp.eq.s32.totalorder %s17, 0
    %p65 = por %p63, %p64
    %s67 = sadd.s32 %s66, 1
    %p70 = scmp.eq.s32.totalorder %s11, 1
    %p71 = scmp.ne.s32.totalorder %s66, %s68
    %p72 = scmp.eq.s32.totalorder %s11, 0
    %p73 = por %p71, %p72
    %p74 = scmp.ne.s32.totalorder %s66, %s68
    %p75 = scmp.eq.s32.totalorder %s16, 1
    %p76 = por %p74, %p75
    %p77 = scmp.ne.s32.totalorder %s68, %s69
    %p78 = scmp.eq.s32.totalorder %s16, 0
    %p79 = por %p77, %p78
    %p80 = scmp.ne.s32.totalorder %s68, %s69
    %p81 = scmp.eq.s32.totalorder %s17, 1
    %p82 = por %p80, %p81
    %p84 = scmp.ne.s32.totalorder %s69, %s83
    %p85 = scmp.eq.s32.totalorder %s17, 0
    %p86 = por %p84, %p85
    %s88 = sadd.s32 %s87, 1
    %p91 = scmp.eq.s32.totalorder %s11, 1
    %p92 = scmp.ne.s32.totalorder %s87, %s89
    %p93 = scmp.eq.s32.totalorder %s11, 0
    %p94 = por %p92, %p93
    %p95 = scmp.ne.s32.totalorder %s87, %s89
    %p96 = scmp.eq.s32.totalorder %s16, 1
    %p97 = por %p95, %p96
    %p98 = scmp.ne.s32.totalorder %s89, %s90
    %p99 = scmp.eq.s32.totalorder %s16, 0
    %p100 = por %p98, %p99
    %p101 = scmp.ne.s32.totalorder %s89, %s90
    %p102 = scmp.eq.s32.totalorder %s17, 1
    %p103 = por %p101, %p102
    %p105 = scmp.ne.s32.totalorder %s90, %s104
    %p106 = scmp.eq.s32.totalorder %s17, 0
    %p107 = por %p105, %p106
    %s109 = sadd.s32 %s108, 1
    %p112 = scmp.eq.s32.totalorder %s11, 1
    %p113 = scmp.ne.s32.totalorder %s108, %s110
    %p114 = scmp.eq.s32.totalorder %s11, 0
    %p115 = por %p113, %p114
    %p116 = scmp.ne.s32.totalorder %s108, %s110
    %p117 = scmp.eq.s32.totalorder %s16, 1
    %p118 = por %p116, %p117
    %p119 = scmp.ne.s32.totalorder %s110, %s111
    %p120 = scmp.eq.s32.totalorder %s16, 0
    %p121 = por %p119, %p120
    %p122 = scmp.ne.s32.totalorder %s110, %s111
    %p123 = scmp.eq.s32.totalorder %s17, 1
    %p124 = por %p122, %p123
    %p126 = scmp.ne.s32.totalorder %s111, %s125
    %p127 = scmp.eq.s32.totalorder %s17, 0
    %p128 = por %p126, %p127
    %s129 = ssub.s32 %s11, %s18
    %p130 = scmp.eq.s32.totalorder %s129, 0
    %s132 = sadd.s32 %s131, 1
    %s133 = scalar_select %p130, %s131, %s132
    %p136 = pneg %p130
    %p137 = scmp.eq.s32.totalorder %s11, 1
    %p138 = por %p136, %p137
    %p139 = scmp.ne.s32.totalorder %s131, %s134
    %p140 = scmp.eq.s32.totalorder %s11, 0
    %p141 = por %p139, %p140
    %p142 = scmp.ne.s32.totalorder %s131, %s134
    %p143 = scmp.eq.s32.totalorder %s16, 1
    %p144 = por %p142, %p143
    %p145 = scmp.ne.s32.totalorder %s134, %s135
    %p146 = scmp.eq.s32.totalorder %s16, 0
    %p147 = por %p145, %p146
    %p148 = scmp.ne.s32.totalorder %s134, %s135
    %p149 = scmp.eq.s32.totalorder %s17, 1
    %p150 = por %p148, %p149
    %p152 = scmp.ne.s32.totalorder %s135, %s151
    %p153 = scmp.eq.s32.totalorder %s17, 0
    %p154 = por %p152, %p153
    %p155 = scmp.le.s32.totalorder 1, %s11
    %p156 = scmp.lt.s32.totalorder %s11, 3
    %p157 = pnand %p155, %p156
    %p158 = pneg %p157
    // Predicated region
    $region9: #{tpu_custom_call.1} parent=5 // pred_check
      _
    $region10: #{tpu_custom_call.1} parent=5 // pred_check_branch
      %160 = sbr.rel (%p157) target = $region12
    $region11: #{tpu_custom_call.1} parent=5 // pred_region
      %s161 = ssub.s32 %s11, 1
      // Predicated region
      $region13: #{tpu_custom_call.1} parent=11 // pred_check
        %p162 = pneg %p58
      $region14: #{tpu_custom_call.1} parent=11 // pred_check_branch
        %164 = sbr.rel (%p162) target = $region16
      $region15: #{tpu_custom_call.1} parent=11 // pred_region
        _
      $region16: #{tpu_custom_call.1} parent=11 // pred_fallthru
        _
      // Predicated region
      $region17: #{tpu_custom_call.1} parent=11 // pred_check
        %p165 = pneg %p79
      $region18: #{tpu_custom_call.1} parent=11 // pred_check_branch
        %167 = sbr.rel (%p165) target = $region20
      $region19: #{tpu_custom_call.1} parent=11 // pred_region
        _
      $region20: #{tpu_custom_call.1} parent=11 // pred_fallthru
        _
      // Predicated region
      $region21: #{tpu_custom_call.1} parent=11 // pred_check
        %p168 = pneg %p100
      $region22: #{tpu_custom_call.1} parent=11 // pred_check_branch
        %170 = sbr.rel (%p168) target = $region24
      $region23: #{tpu_custom_call.1} parent=11 // pred_region
        _
      $region24: #{tpu_custom_call.1} parent=11 // pred_fallthru
        _
      // Predicated region
      $region25: #{tpu_custom_call.1} parent=11 // pred_check
        %p171 = pneg %p121
      $region26: #{tpu_custom_call.1} parent=11 // pred_check_branch
        %173 = sbr.rel (%p171) target = $region28
      $region27: #{tpu_custom_call.1} parent=11 // pred_region
        _
      $region28: #{tpu_custom_call.1} parent=11 // pred_fallthru
        _
    $region12: #{tpu_custom_call.1} parent=5 // pred_fallthru
      _
    %p174 = scmp.lt.s32.totalorder %s11, 2
    // Predicated region
    $region29: #{tpu_custom_call.1} parent=5 // pred_check
      %p175 = pneg %p174
    $region30: #{tpu_custom_call.1} parent=5 // pred_check_branch
      %177 = sbr.rel (%p175) target = $region32
    $region31: #{tpu_custom_call.1} parent=5 // pred_region
      // Predicated region
      $region33: #{tpu_custom_call.1} parent=31 // pred_check
        %p178 = pneg %p31
      $region34: #{tpu_custom_call.1} parent=31 // pred_check_branch
        %180 = sbr.rel (%p178) target = $region36
      $region35: #{tpu_custom_call.1} parent=31 // pred_region
        %s181 = smul.u32 32, %s11
        %p182 = scmp.lt.s32.totalorder %s181, 63
        %s183 = scalar_select %p182, %s181, 63
        %s184 = smul.addr %s183, 8
        %s185 = scalar_lea.vmem %s0, %s184
        %s186 = smul.u32 32, %s11
      $region36: #{tpu_custom_call.1} parent=31 // pred_fallthru
        _
    $region32: #{tpu_custom_call.1} parent=5 // pred_fallthru
      _
    %p187 = scmp.le.s32.totalorder 1, %s11
    %p188 = scmp.lt.s32.totalorder %s11, 3
    %p189 = pnand %p187, %p188
    %p190 = pneg %p189
    // Predicated region
    $region37: #{tpu_custom_call.1} parent=5 // pred_check
      _
    $region38: #{tpu_custom_call.1} parent=5 // pred_check_branch
      %192 = sbr.rel (%p189) target = $region40
    $region39: #{tpu_custom_call.1} parent=5 // pred_region
      %s193 = ssub.s32 %s11, 1
      %s194 = smul.u32 32, %s16
      %p195 = scmp.lt.s32.totalorder %s194, 63
      %s196 = scalar_select %p195, %s194, 63
      %s197 = smul.addr %s196, 8
      %s198 = scalar_lea.vmem %s0, %s197
      %p199 = pneg %p37
      %p200 = pneg %p34
      %p201 = pneg %p58
      %p202 = pneg %p55
      %p203 = pneg %p79
      %p204 = pneg %p76
      %p205 = pneg %p100
      %p206 = pneg %p97
      %p207 = pneg %p121
      %p208 = pneg %p118
      %p209 = pneg %p147
      %p210 = pneg %p144
      %p211 = scmp.lt.s32.totalorder %s16, 1
      %s212 = scalar_select %p211, %s16, 1
      %s213 = smul.addr %s212, 7
      %s214 = smul.addr %s213, 8
      %s215 = scalar_lea.vmem %s5, %s214
      %s216 = smul.u32 32, %s16
      %p217 = scmp.lt.s32.totalorder %s216, 63
      %s218 = scalar_select %p217, %s216, 63
      %s219 = smul.addr %s218, 8
      %s220 = scalar_lea.vmem %s0, %s219
      %s221 = smul.u32 32, %s16
      %p222 = scmp.lt.s32.totalorder %s16, 1
      %s223 = scalar_select %p222, %s16, 1
      %s224 = smul.addr %s223, 7
      %s225 = smul.addr %s224, 8
      %s226 = scalar_lea.vmem %s5, %s225
      %v227 = vld [vmem:[%s220] sm:$0xff]
      %v228 = vld [vmem:[%s220 + $0x8] sm:$0xff]
      %v229 = vld [vmem:[%s220 + $0x10] sm:$0xff]
      %v230 = vld [vmem:[%s220 + $0x18] sm:$0xff]
      %v231 = vld [vmem:[%s220 + $0x20] sm:$0xff]
      %v232 = vld [vmem:[%s220 + $0x28] sm:$0xff]
      %v233 = vld [vmem:[%s220 + $0x30] sm:$0xff]
      %v234 = vld [vmem:[%s220 + $0x38] sm:$0xff]
      %v235 = vld [vmem:[%s220 + $0x40] sm:$0xff]
      %v236 = vld [vmem:[%s220 + $0x48] sm:$0xff]
      %v237 = vld [vmem:[%s220 + $0x50] sm:$0xff]
      %v238 = vld [vmem:[%s220 + $0x58] sm:$0xff]
      %v239 = vld [vmem:[%s220 + $0x60] sm:$0xff]
      %v240 = vld [vmem:[%s220 + $0x68] sm:$0xff]
      %v241 = vld [vmem:[%s220 + $0x70] sm:$0xff]
      %v242 = vld [vmem:[%s220 + $0x78] sm:$0xff]
      %v243 = vld [vmem:[%s220 + $0x80] sm:$0xff]
      %v244 = vld [vmem:[%s220 + $0x88] sm:$0xff]
      %v245 = vld [vmem:[%s220 + $0x90] sm:$0xff]
      %v246 = vld [vmem:[%s220 + $0x98] sm:$0xff]
      %v247 = vld [vmem:[%s220 + $0xa0] sm:$0xff]
      %v248 = vld [vmem:[%s220 + $0xa8] sm:$0xff]
      %v249 = vld [vmem:[%s220 + $0xb0] sm:$0xff]
      %v250 = vld [vmem:[%s220 + $0xb8] sm:$0xff]
      %v251 = vld [vmem:[%s220 + $0xc0] sm:$0xff]
      %v252 = vld [vmem:[%s220 + $0xc8] sm:$0xff]
      %v253 = vld [vmem:[%s220 + $0xd0] sm:$0xff]
      %v254 = vld [vmem:[%s220 + $0xd8] sm:$0xff]
      %v255 = vld [vmem:[%s220 + $0xe0] sm:$0xff]
      %v256 = vld [vmem:[%s220 + $0xe8] sm:$0xff]
      %v257 = vld [vmem:[%s220 + $0xf0] sm:$0xff]
      %v258 = vld [vmem:[%s220 + $0xf8] sm:$0xff]
      %v259 = vld [vmem:[%s1] sm:$0xff]
      %v260 = vld [vmem:[%s1 + $0x8] sm:$0xf]
      %v261 = vld [vmem:[%s3] sm:$0x1]
      %v262 = vld [vmem:[%s2] sm:$0x1]
      %v264 = vlaneseq
      %v265 = vshrl.u32 %v264, 7
      %v266 = vsub.s32 0, %v265
      %v267 = vrot.slane %v262, %v266
      %vm269 = vcmask 97280
      %v271 = vsel %vm269, %v227, 0
      %v274 = vsel %vm269, %v228, 0
      %v277 = vsel %vm269, %v229, 0
      %v280 = vsel %vm269, %v230, 0
      %v283 = vsel %vm269, %v231, 0
      %v286 = vsel %vm269, %v232, 0
      %v289 = vsel %vm269, %v233, 0
      %v292 = vsel %vm269, %v234, 0
      %v295 = vsel %vm269, %v235, 0
      %v298 = vsel %vm269, %v236, 0
      %v301 = vsel %vm269, %v237, 0
      %v304 = vsel %vm269, %v238, 0
      %v307 = vsel %vm269, %v239, 0
      %v310 = vsel %vm269, %v240, 0
      %v313 = vsel %vm269, %v241, 0
      %v316 = vsel %vm269, %v242, 0
      %v319 = vsel %vm269, %v243, 0
      %v322 = vsel %vm269, %v244, 0
      %v325 = vsel %vm269, %v245, 0
      %v328 = vsel %vm269, %v246, 0
      %v331 = vsel %vm269, %v247, 0
      %v334 = vsel %vm269, %v248, 0
      %v337 = vsel %vm269, %v249, 0
      %v340 = vsel %vm269, %v250, 0
      %v343 = vsel %vm269, %v251, 0
      %v346 = vsel %vm269, %v252, 0
      %v349 = vsel %vm269, %v253, 0
      %v352 = vsel %vm269, %v254, 0
      %v355 = vsel %vm269, %v255, 0
      %v358 = vsel %vm269, %v256, 0
      %v361 = vsel %vm269, %v257, 0
      %v364 = vsel %vm269, %v258, 0
      %vm366 = vcmask 1043456
      %v368 = vsel %vm366, %v260, 0
      %370 = vmatprep.subr.mxu0 0.0
      %371 = vmatpush1.msra.mxu0 %v259
      %372 = vmatprep.subr.mxu0 0.0
      %373 = vmatpush1.msra.mxu0 %v368
      %374 = vmatprep.subr.mxu0 0.0
      %375 = vmatpush1.msra.mxu0 0.0
      %376 = vmatprep.subr.mxu0 0.0
      %377 = vmatpush1.msra.mxu0 0.0
      %378 = vmatprep.subr.mxu0 0.0
      %379 = vmatpush1.msra.mxu0 0.0
      %380 = vmatprep.subr.mxu0 0.0
      %381 = vmatpush1.msra.mxu0 0.0
      %382 = vmatprep.subr.mxu0 0.0
      %383 = vmatpush1.msra.mxu0 0.0
      %384 = vmatprep.subr.mxu0 0.0
      %385 = vmatpush1.msra.mxu0 0.0
      %386 = vmatprep.subr.mxu0 0.0
      %387 = vmatpush1.msra.mxu0 0.0
      %388 = vmatprep.subr.mxu0 0.0
      %389 = vmatpush1.msra.mxu0 0.0
      %390 = vmatprep.subr.mxu0 0.0
      %391 = vmatpush1.msra.mxu0 0.0
      %392 = vmatprep.subr.mxu0 0.0
      %393 = vmatpush1.msra.mxu0 0.0
      %394 = vmatprep.subr.mxu0 0.0
      %395 = vmatpush1.msra.mxu0 0.0
      %396 = vmatprep.subr.mxu0 0.0
      %397 = vmatpush1.msra.mxu0 0.0
      %398 = vmatprep.subr.mxu0 0.0
      %399 = vmatpush1.msra.mxu0 0.0
      %400 = vmatprep.subr.mxu0 0.0
      %401 = vmatpush1.msra.mxu0 0.0
      %402 = vmatprep.subr.mxu0 0.0
      %403 = vmatpush1.msra.mxu0 0.0
      %404 = vmatprep.subr.mxu0 0.0
      %405 = vmatpush1.msra.mxu0 0.0
      %406 = vmatprep.subr.mxu0 0.0
      %407 = vmatpush1.msra.mxu0 0.0
      %408 = vmatprep.subr.mxu0 0.0
      %409 = vmatpush1.msra.mxu0 0.0
      %410 = vmatprep.subr.mxu0 0.0
      %411 = vmatpush1.msra.mxu0 0.0
      %412 = vmatprep.subr.mxu0 0.0
      %413 = vmatpush1.msra.mxu0 0.0
      %414 = vmatprep.subr.mxu0 0.0
      %415 = vmatpush1.msra.mxu0 0.0
      %416 = vmatprep.subr.mxu0 0.0
      %417 = vmatpush1.msra.mxu0 0.0
      %418 = vmatprep.subr.mxu0 0.0
      %419 = vmatpush1.msra.mxu0 0.0
      %420 = vmatprep.subr.mxu0 0.0
      %421 = vmatpush1.msra.mxu0 0.0
      %422 = vmatprep.subr.mxu0 0.0
      %423 = vmatpush1.msra.mxu0 0.0
      %424 = vmatprep.subr.mxu0 0.0
      %425 = vmatpush1.msra.mxu0 0.0
      %426 = vmatprep.subr.mxu0 0.0
      %427 = vmatpush1.msra.mxu0 0.0
      %428 = vmatprep.subr.mxu0 0.0
      %429 = vmatpush1.msra.mxu0 0.0
      %430 = vmatprep.subr.mxu0 0.0
      %431 = vmatpush1.msra.mxu0 0.0
      %432 = vmatprep.subr.mxu0 0.0
      %433 = vmatpush1.msra.mxu0 0.0
      %434 = vmatprep.mubr.f32.mxu0 0.0
      %435 = vmatmul.mubr.f32.gmra.mrb[0].mxu0 %v271
      %v436 = vpop.f32.mrb[0].mxu0
      %v437 = vadd.f32 %v267, %v436
      %v438 = vpop.f32.mrb[0].mxu0
      %439 = vmatprep.mubr.f32.mxu0 0.0
      %440 = vmatmul.mubr.f32.gmra.mrb[0].mxu0 %v274
      %v441 = vpop.f32.mrb[0].mxu0
      %v442 = vadd.f32 %v267, %v441
      %v443 = vpop.f32.mrb[0].mxu0
      %444 = vmatprep.mubr.f32.mxu0 0.0
      %445 = vmatmul.mubr.f32.gmra.mrb[0].mxu0 %v277
      %v446 = vpop.f32.mrb[0].mxu0
      %v447 = vadd.f32 %v267, %v446
      %v448 = vpop.f32.mrb[0].mxu0
      %449 = vmatprep.mubr.f32.mxu0 0.0
      %450 = vmatmul.mubr.f32.gmra.mrb[0].mxu0 %v280
      %v451 = vpop.f32.mrb[0].mxu0
      %v452 = vadd.f32 %v267, %v451
      %v453 = vpop.f32.mrb[0].mxu0
      %454 = vmatprep.mubr.f32.mxu0 0.0
      %455 = vmatmul.mubr.f32.gmra.mrb[0].mxu0 %v283
      %v456 = vpop.f32.mrb[0].mxu0
      %v457 = vadd.f32 %v267, %v456
      %v458 = vpop.f32.mrb[0].mxu0
      %459 = vmatprep.mubr.f32.mxu0 0.0
      %460 = vmatmul.mubr.f32.gmra.mrb[0].mxu0 %v286
      %v461 = vpop.f32.mrb[0].mxu0
      %v462 = vadd.f32 %v267, %v461
      %v463 = vpop.f32.mrb[0].mxu0
      %464 = vmatprep.mubr.f32.mxu0 0.0
      %465 = vmatmul.mubr.f32.gmra.mrb[0].mxu0 %v289
      %v466 = vpop.f32.mrb[0].mxu0
      %v467 = vadd.f32 %v267, %v466
      %v468 = vpop.f32.mrb[0].mxu0
      %469 = vmatprep.mubr.f32.mxu0 0.0
      %470 = vmatmul.mubr.f32.gmra.mrb[0].mxu0 %v292
      %v471 = vpop.f32.mrb[0].mxu0
      %v472 = vadd.f32 %v267, %v471
      %v473 = vpop.f32.mrb[0].mxu0
      %474 = vmatprep.mubr.f32.mxu0 0.0
      %475 = vmatmul.mubr.f32.gmra.mrb[0].mxu0 %v295
      %v476 = vpop.f32.mrb[0].mxu0
      %v477 = vadd.f32 %v267, %v476
      %v478 = vpop.f32.mrb[0].mxu0
      %479 = vmatprep.mubr.f32.mxu0 0.0
      %480 = vmatmul.mubr.f32.gmra.mrb[0].mxu0 %v298
      %v481 = vpop.f32.mrb[0].mxu0
      %v482 = vadd.f32 %v267, %v481
      %v483 = vpop.f32.mrb[0].mxu0
      %484 = vmatprep.mubr.f32.mxu0 0.0
      %485 = vmatmul.mubr.f32.gmra.mrb[0].mxu0 %v301
      %v486 = vpop.f32.mrb[0].mxu0
      %v487 = vadd.f32 %v267, %v486
      %v488 = vpop.f32.mrb[0].mxu0
      %489 = vmatprep.mubr.f32.mxu0 0.0
      %490 = vmatmul.mubr.f32.gmra.mrb[0].mxu0 %v304
      %v491 = vpop.f32.mrb[0].mxu0
      %v492 = vadd.f32 %v267, %v491
      %v493 = vpop.f32.mrb[0].mxu0
      %494 = vmatprep.mubr.f32.mxu0 0.0
      %495 = vmatmul.mubr.f32.gmra.mrb[0].mxu0 %v307
      %v496 = vpop.f32.mrb[0].mxu0
      %v497 = vadd.f32 %v267, %v496
      %v498 = vpop.f32.mrb[0].mxu0
      %499 = vmatprep.mubr.f32.mxu0 0.0
      %500 = vmatmul.mubr.f32.gmra.mrb[0].mxu0 %v310
      %v501 = vpop.f32.mrb[0].mxu0
      %v502 = vadd.f32 %v267, %v501
      %v503 = vpop.f32.mrb[0].mxu0
      %504 = vmatprep.mubr.f32.mxu0 0.0
      %505 = vmatmul.mubr.f32.gmra.mrb[0].mxu0 %v313
      %v506 = vpop.f32.mrb[0].mxu0
      %v507 = vadd.f32 %v267, %v506
      %v508 = vpop.f32.mrb[0].mxu0
      %509 = vmatprep.mubr.f32.mxu0 0.0
      %510 = vmatmul.mubr.f32.gmra.mrb[0].mxu0 %v316
      %v511 = vpop.f32.mrb[0].mxu0
      %v512 = vadd.f32 %v267, %v511
      %v513 = vpop.f32.mrb[0].mxu0
      %514 = vmatprep.mubr.f32.mxu0 0.0
      %515 = vmatmul.mubr.f32.gmra.mrb[0].mxu0 %v319
      %v516 = vpop.f32.mrb[0].mxu0
      %v517 = vadd.f32 %v267, %v516
      %v518 = vpop.f32.mrb[0].mxu0
      %519 = vmatprep.mubr.f32.mxu0 0.0
      %520 = vmatmul.mubr.f32.gmra.mrb[0].mxu0 %v322
      %v521 = vpop.f32.mrb[0].mxu0
      %v522 = vadd.f32 %v267, %v521
      %v523 = vpop.f32.mrb[0].mxu0
      %524 = vmatprep.mubr.f32.mxu0 0.0
      %525 = vmatmul.mubr.f32.gmra.mrb[0].mxu0 %v325
      %v526 = vpop.f32.mrb[0].mxu0
      %v527 = vadd.f32 %v267, %v526
      %v528 = vpop.f32.mrb[0].mxu0
      %529 = vmatprep.mubr.f32.mxu0 0.0
      %530 = vmatmul.mubr.f32.gmra.mrb[0].mxu0 %v328
      %v531 = vpop.f32.mrb[0].mxu0
      %v532 = vadd.f32 %v267, %v531
      %v533 = vpop.f32.mrb[0].mxu0
      %534 = vmatprep.mubr.f32.mxu0 0.0
      %535 = vmatmul.mubr.f32.gmra.mrb[0].mxu0 %v331
      %v536 = vpop.f32.mrb[0].mxu0
      %v537 = vadd.f32 %v267, %v536
      %v538 = vpop.f32.mrb[0].mxu0
      %539 = vmatprep.mubr.f32.mxu0 0.0
      %540 = vmatmul.mubr.f32.gmra.mrb[0].mxu0 %v334
      %v541 = vpop.f32.mrb[0].mxu0
      %v542 = vadd.f32 %v267, %v541
      %v543 = vpop.f32.mrb[0].mxu0
      %544 = vmatprep.mubr.f32.mxu0 0.0
      %545 = vmatmul.mubr.f32.gmra.mrb[0].mxu0 %v337
      %v546 = vpop.f32.mrb[0].mxu0
      %v547 = vadd.f32 %v267, %v546
      %v548 = vpop.f32.mrb[0].mxu0
      %549 = vmatprep.mubr.f32.mxu0 0.0
      %550 = vmatmul.mubr.f32.gmra.mrb[0].mxu0 %v340
      %v551 = vpop.f32.mrb[0].mxu0
      %v552 = vadd.f32 %v267, %v551
      %v553 = vpop.f32.mrb[0].mxu0
      %554 = vmatprep.mubr.f32.mxu0 0.0
      %555 = vmatmul.mubr.f32.gmra.mrb[0].mxu0 %v343
      %v556 = vpop.f32.mrb[0].mxu0
      %v557 = vadd.f32 %v267, %v556
      %v558 = vpop.f32.mrb[0].mxu0
      %559 = vmatprep.mubr.f32.mxu0 0.0
      %560 = vmatmul.mubr.f32.gmra.mrb[0].mxu0 %v346
      %v561 = vpop.f32.mrb[0].mxu0
      %v562 = vadd.f32 %v267, %v561
      %v563 = vpop.f32.mrb[0].mxu0
      %564 = vmatprep.mubr.f32.mxu0 0.0
      %565 = vmatmul.mubr.f32.gmra.mrb[0].mxu0 %v349
      %v566 = vpop.f32.mrb[0].mxu0
      %v567 = vadd.f32 %v267, %v566
      %v568 = vpop.f32.mrb[0].mxu0
      %569 = vmatprep.mubr.f32.mxu0 0.0
      %570 = vmatmul.mubr.f32.gmra.mrb[0].mxu0 %v352
      %v571 = vpop.f32.mrb[0].mxu0
      %v572 = vadd.f32 %v267, %v571
      %v573 = vpop.f32.mrb[0].mxu0
      %574 = vmatprep.mubr.f32.mxu0 0.0
      %575 = vmatmul.mubr.f32.gmra.mrb[0].mxu0 %v355
      %v576 = vpop.f32.mrb[0].mxu0
      %v577 = vadd.f32 %v267, %v576
      %v578 = vpop.f32.mrb[0].mxu0
      %579 = vmatprep.mubr.f32.mxu0 0.0
      %580 = vmatmul.mubr.f32.gmra.mrb[0].mxu0 %v358
      %v581 = vpop.f32.mrb[0].mxu0
      %v582 = vadd.f32 %v267, %v581
      %v583 = vpop.f32.mrb[0].mxu0
      %584 = vmatprep.mubr.f32.mxu0 0.0
      %585 = vmatmul.mubr.f32.gmra.mrb[0].mxu0 %v361
      %v586 = vpop.f32.mrb[0].mxu0
      %v587 = vadd.f32 %v267, %v586
      %v588 = vpop.f32.mrb[0].mxu0
      %589 = vmatprep.mubr.f32.mxu0 0.0
      %590 = vmatmul.mubr.f32.gmra.mrb[0].mxu0 %v364
      %v591 = vpop.f32.mrb[0].mxu0
      %v592 = vadd.f32 %v267, %v591
      %v593 = vpop.f32.mrb[0].mxu0
      %594 = vdwg.mxu0
      %v596 = vlaneseq
      %v597 = vshrl.u32 %v596, 7
      %v598 = vsub.s32 0, %v597
      %v599 = vrot.slane %v261, %v598
      %v601 = vmul.f32 %v599, %v437
      %v602 = vmul.f32 %v599, %v442
      %v603 = vmul.f32 %v599, %v447
      %v604 = vmul.f32 %v599, %v452
      %v605 = vmul.f32 %v599, %v457
      %v606 = vmul.f32 %v599, %v462
      %v607 = vmul.f32 %v599, %v467
      %v608 = vmul.f32 %v599, %v472
      %v609 = vmul.f32 %v599, %v477
      %v610 = vmul.f32 %v599, %v482
      %v611 = vmul.f32 %v599, %v487
      %v612 = vmul.f32 %v599, %v492
      %v613 = vmul.f32 %v599, %v497
      %v614 = vmul.f32 %v599, %v502
      %v615 = vmul.f32 %v599, %v507
      %v616 = vmul.f32 %v599, %v512
      %v617 = vmul.f32 %v599, %v517
      %v618 = vmul.f32 %v599, %v522
      %v619 = vmul.f32 %v599, %v527
      %v620 = vmul.f32 %v599, %v532
      %v621 = vmul.f32 %v599, %v537
      %v622 = vmul.f32 %v599, %v542
      %v623 = vmul.f32 %v599, %v547
      %v624 = vmul.f32 %v599, %v552
      %v625 = vmul.f32 %v599, %v557
      %v626 = vmul.f32 %v599, %v562
      %v627 = vmul.f32 %v599, %v567
      %v628 = vmul.f32 %v599, %v572
      %v629 = vmul.f32 %v599, %v577
      %v630 = vmul.f32 %v599, %v582
      %v631 = vmul.f32 %v599, %v587
      %v632 = vmul.f32 %v599, %v592
      %v633 = vld [vmem:[%s4] sm:$0x1]
      %v635 = vlaneseq
      %v636 = vshrl.u32 %v635, 7
      %v637 = vsub.s32 0, %v636
      %v638 = vrot.slane %v633, %v637
      %v640 = vadd.f32 %v601, %v638
      %v641 = vadd.f32 %v602, %v638
      %v642 = vadd.f32 %v603, %v638
      %v643 = vadd.f32 %v604, %v638
      %v644 = vadd.f32 %v605, %v638
      %v645 = vadd.f32 %v606, %v638
      %v646 = vadd.f32 %v607, %v638
      %v647 = vadd.f32 %v608, %v638
      %v648 = vadd.f32 %v609, %v638
      %v649 = vadd.f32 %v610, %v638
      %v650 = vadd.f32 %v611, %v638
      %v651 = vadd.f32 %v612, %v638
      %v652 = vadd.f32 %v613, %v638
      %v653 = vadd.f32 %v614, %v638
      %v654 = vadd.f32 %v615, %v638
      %v655 = vadd.f32 %v616, %v638
      %v656 = vadd.f32 %v617, %v638
      %v657 = vadd.f32 %v618, %v638
      %v658 = vadd.f32 %v619, %v638
      %v659 = vadd.f32 %v620, %v638
      %v660 = vadd.f32 %v621, %v638
      %v661 = vadd.f32 %v622, %v638
      %v662 = vadd.f32 %v623, %v638
      %v663 = vadd.f32 %v624, %v638
      %v664 = vadd.f32 %v625, %v638
      %v665 = vadd.f32 %v626, %v638
      %v666 = vadd.f32 %v627, %v638
      %v667 = vadd.f32 %v628, %v638
      %v668 = vadd.f32 %v629, %v638
      %v669 = vadd.f32 %v630, %v638
      %v670 = vadd.f32 %v631, %v638
      %v671 = vadd.f32 %v632, %v638
      %v672 = vmax.f32 %v640, 0.0
      %v673 = vmax.f32 %v641, 0.0
      %v674 = vmax.f32 %v642, 0.0
      %v675 = vmax.f32 %v643, 0.0
      %v676 = vmax.f32 %v644, 0.0
      %v677 = vmax.f32 %v645, 0.0
      %v678 = vmax.f32 %v646, 0.0
      %v679 = vmax.f32 %v647, 0.0
      %v680 = vmax.f32 %v648, 0.0
      %v681 = vmax.f32 %v649, 0.0
      %v682 = vmax.f32 %v650, 0.0
      %v683 = vmax.f32 %v651, 0.0
      %v684 = vmax.f32 %v652, 0.0
      %v685 = vmax.f32 %v653, 0.0
      %v686 = vmax.f32 %v654, 0.0
      %v687 = vmax.f32 %v655, 0.0
      %v688 = vmax.f32 %v656, 0.0
      %v689 = vmax.f32 %v657, 0.0
      %v690 = vmax.f32 %v658, 0.0
      %v691 = vmax.f32 %v659, 0.0
      %v692 = vmax.f32 %v660, 0.0
      %v693 = vmax.f32 %v661, 0.0
      %v694 = vmax.f32 %v662, 0.0
      %v695 = vmax.f32 %v663, 0.0
      %v696 = vmax.f32 %v664, 0.0
      %v697 = vmax.f32 %v665, 0.0
      %v698 = vmax.f32 %v666, 0.0
      %v699 = vmax.f32 %v667, 0.0
      %v700 = vmax.f32 %v668, 0.0
      %v701 = vmax.f32 %v669, 0.0
      %v702 = vmax.f32 %v670, 0.0
      %v703 = vmax.f32 %v671, 0.0
      %vm704 = vcmask 523264
      %705 = vst.msk [vmem:[#allocation2] sm:$0xff] %vm704, %v672
      %706 = vst.msk [vmem:[#allocation2 + $0x8] sm:$0xff] %vm704, %v673
      %707 = vst.msk [vmem:[#allocation2 + $0x10] sm:$0xff] %vm704, %v674
      %708 = vst.msk [vmem:[#allocation2 + $0x18] sm:$0xff] %vm704, %v675
      %709 = vst.msk [vmem:[#allocation2 + $0x20] sm:$0xff] %vm704, %v676
      %710 = vst.msk [vmem:[#allocation2 + $0x28] sm:$0xff] %vm704, %v677
      %711 = vst.msk [vmem:[#allocation2 + $0x30] sm:$0xff] %vm704, %v678
      %712 = vst.msk [vmem:[#allocation2 + $0x38] sm:$0xff] %vm704, %v679
      %713 = vst.msk [vmem:[#allocation2 + $0x40] sm:$0xff] %vm704, %v680
      %714 = vst.msk [vmem:[#allocation2 + $0x48] sm:$0xff] %vm704, %v681
      %715 = vst.msk [vmem:[#allocation2 + $0x50] sm:$0xff] %vm704, %v682
      %716 = vst.msk [vmem:[#allocation2 + $0x58] sm:$0xff] %vm704, %v683
      %717 = vst.msk [vmem:[#allocation2 + $0x60] sm:$0xff] %vm704, %v684
      %718 = vst.msk [vmem:[#allocation2 + $0x68] sm:$0xff] %vm704, %v685
      %719 = vst.msk [vmem:[#allocation2 + $0x70] sm:$0xff] %vm704, %v686
      %720 = vst.msk [vmem:[#allocation2 + $0x78] sm:$0xff] %vm704, %v687
      %721 = vst.msk [vmem:[#allocation2 + $0x80] sm:$0xff] %vm704, %v688
      %722 = vst.msk [vmem:[#allocation2 + $0x88] sm:$0xff] %vm704, %v689
      %723 = vst.msk [vmem:[#allocation2 + $0x90] sm:$0xff] %vm704, %v690
      %724 = vst.msk [vmem:[#allocation2 + $0x98] sm:$0xff] %vm704, %v691
      %725 = vst.msk [vmem:[#allocation2 + $0xa0] sm:$0xff] %vm704, %v692
      %726 = vst.msk [vmem:[#allocation2 + $0xa8] sm:$0xff] %vm704, %v693
      %727 = vst.msk [vmem:[#allocation2 + $0xb0] sm:$0xff] %vm704, %v694
      %728 = vst.msk [vmem:[#allocation2 + $0xb8] sm:$0xff] %vm704, %v695
      %729 = vst.msk [vmem:[#allocation2 + $0xc0] sm:$0xff] %vm704, %v696
      %730 = vst.msk [vmem:[#allocation2 + $0xc8] sm:$0xff] %vm704, %v697
      %731 = vst.msk [vmem:[#allocation2 + $0xd0] sm:$0xff] %vm704, %v698
      %732 = vst.msk [vmem:[#allocation2 + $0xd8] sm:$0xff] %vm704, %v699
      %733 = vst.msk [vmem:[#allocation2 + $0xe0] sm:$0xff] %vm704, %v700
      %734 = vst.msk [vmem:[#allocation2 + $0xe8] sm:$0xff] %vm704, %v701
      %735 = vst.msk [vmem:[#allocation2 + $0xf0] sm:$0xff] %vm704, %v702
      %736 = vst.msk [vmem:[#allocation2 + $0xf8] sm:$0xff] %vm704, %v703
      %v737 = vld [vmem:[#allocation2] sm:$0xff]
      %v738 = vld [vmem:[#allocation2 + $0x8] sm:$0xff]
      %v739 = vld [vmem:[#allocation2 + $0x10] sm:$0xff]
      %v740 = vld [vmem:[#allocation2 + $0x18] sm:$0xff]
      %v741 = vld [vmem:[#allocation2 + $0x20] sm:$0xff]
      %v742 = vld [vmem:[#allocation2 + $0x28] sm:$0xff]
      %v743 = vld [vmem:[#allocation2 + $0x30] sm:$0xff]
      %v744 = vld [vmem:[#allocation2 + $0x38] sm:$0xff]
      %v745 = vld [vmem:[#allocation2 + $0x40] sm:$0xff]
      %v746 = vld [vmem:[#allocation2 + $0x48] sm:$0xff]
      %v747 = vld [vmem:[#allocation2 + $0x50] sm:$0xff]
      %v748 = vld [vmem:[#allocation2 + $0x58] sm:$0xff]
      %v749 = vld [vmem:[#allocation2 + $0x60] sm:$0xff]
      %v750 = vld [vmem:[#allocation2 + $0x68] sm:$0xff]
      %v751 = vld [vmem:[#allocation2 + $0x70] sm:$0xff]
      %v752 = vld [vmem:[#allocation2 + $0x78] sm:$0xff]
      %v753 = vld [vmem:[#allocation2 + $0x80] sm:$0xff]
      %v754 = vld [vmem:[#allocation2 + $0x88] sm:$0xff]
      %v755 = vld [vmem:[#allocation2 + $0x90] sm:$0xff]
      %v756 = vld [vmem:[#allocation2 + $0x98] sm:$0xff]
      %v757 = vld [vmem:[#allocation2 + $0xa0] sm:$0xff]
      %v758 = vld [vmem:[#allocation2 + $0xa8] sm:$0xff]
      %v759 = vld [vmem:[#allocation2 + $0xb0] sm:$0xff]
      %v760 = vld [vmem:[#allocation2 + $0xb8] sm:$0xff]
      %v761 = vld [vmem:[#allocation2 + $0xc0] sm:$0xff]
      %v762 = vld [vmem:[#allocation2 + $0xc8] sm:$0xff]
      %v763 = vld [vmem:[#allocation2 + $0xd0] sm:$0xff]
      %v764 = vld [vmem:[#allocation2 + $0xd8] sm:$0xff]
      %v765 = vld [vmem:[#allocation2 + $0xe0] sm:$0xff]
      %v766 = vld [vmem:[#allocation2 + $0xe8] sm:$0xff]
      %v767 = vld [vmem:[#allocation2 + $0xf0] sm:$0xff]
      %v768 = vld [vmem:[#allocation2 + $0xf8] sm:$0x7f]
      %v769 = vld [vmem:[#allocation2 + $0x1] sm:$0xff]
      %v770 = vld [vmem:[#allocation2 + $0x9] sm:$0xff]
      %v771 = vld [vmem:[#allocation2 + $0x11] sm:$0xff]
      %v772 = vld [vmem:[#allocation2 + $0x19] sm:$0xff]
      %v773 = vld [vmem:[#allocation2 + $0x21] sm:$0xff]
      %v774 = vld [vmem:[#allocation2 + $0x29] sm:$0xff]
      %v775 = vld [vmem:[#allocation2 + $0x31] sm:$0xff]
      %v776 = vld [vmem:[#allocation2 + $0x39] sm:$0xff]
      %v777 = vld [vmem:[#allocation2 + $0x41] sm:$0xff]
      %v778 = vld [vmem:[#allocation2 + $0x49] sm:$0xff]
      %v779 = vld [vmem:[#allocation2 + $0x51] sm:$0xff]
      %v780 = vld [vmem:[#allocation2 + $0x59] sm:$0xff]
      %v781 = vld [vmem:[#allocation2 + $0x61] sm:$0xff]
      %v782 = vld [vmem:[#allocation2 + $0x69] sm:$0xff]
      %v783 = vld [vmem:[#allocation2 + $0x71] sm:$0xff]
      %v784 = vld [vmem:[#allocation2 + $0x79] sm:$0xff]
      %v785 = vld [vmem:[#allocation2 + $0x81] sm:$0xff]
      %v786 = vld [vmem:[#allocation2 + $0x89] sm:$0xff]
      %v787 = vld [vmem:[#allocation2 + $0x91] sm:$0xff]
      %v788 = vld [vmem:[#allocation2 + $0x99] sm:$0xff]
      %v789 = vld [vmem:[#allocation2 + $0xa1] sm:$0xff]
      %v790 = vld [vmem:[#allocation2 + $0xa9] sm:$0xff]
      %v791 = vld [vmem:[#allocation2 + $0xb1] sm:$0xff]
      %v792 = vld [vmem:[#allocation2 + $0xb9] sm:$0xff]
      %v793 = vld [vmem:[#allocation2 + $0xc1] sm:$0xff]
      %v794 = vld [vmem:[#allocation2 + $0xc9] sm:$0xff]
      %v795 = vld [vmem:[#allocation2 + $0xd1] sm:$0xff]
      %v796 = vld [vmem:[#allocation2 + $0xd9] sm:$0xff]
      %v797 = vld [vmem:[#allocation2 + $0xe1] sm:$0xff]
      %v798 = vld [vmem:[#allocation2 + $0xe9] sm:$0xff]
      %v799 = vld [vmem:[#allocation2 + $0xf1] sm:$0xff]
      %v800 = vld [vmem:[#allocation2 + $0xf9] sm:$0x7f]
      %v801 = vmax.f32 %v737, %v769
      %v802 = vmax.f32 %v738, %v770
      %v803 = vmax.f32 %v739, %v771
      %v804 = vmax.f32 %v740, %v772
      %v805 = vmax.f32 %v741, %v773
      %v806 = vmax.f32 %v742, %v774
      %v807 = vmax.f32 %v743, %v775
      %v808 = vmax.f32 %v744, %v776
      %v809 = vmax.f32 %v745, %v777
      %v810 = vmax.f32 %v746, %v778
      %v811 = vmax.f32 %v747, %v779
      %v812 = vmax.f32 %v748, %v780
      %v813 = vmax.f32 %v749, %v781
      %v814 = vmax.f32 %v750, %v782
      %v815 = vmax.f32 %v751, %v783
      %v816 = vmax.f32 %v752, %v784
      %v817 = vmax.f32 %v753, %v785
      %v818 = vmax.f32 %v754, %v786
      %v819 = vmax.f32 %v755, %v787
      %v820 = vmax.f32 %v756, %v788
      %v821 = vmax.f32 %v757, %v789
      %v822 = vmax.f32 %v758, %v790
      %v823 = vmax.f32 %v759, %v791
      %v824 = vmax.f32 %v760, %v792
      %v825 = vmax.f32 %v761, %v793
      %v826 = vmax.f32 %v762, %v794
      %v827 = vmax.f32 %v763, %v795
      %v828 = vmax.f32 %v764, %v796
      %v829 = vmax.f32 %v765, %v797
      %v830 = vmax.f32 %v766, %v798
      %v831 = vmax.f32 %v767, %v799
      %v832 = vmax.f32 %v768, %v800
      %833 = vst.msk [vmem:[#allocation2] sm:$0xff] %vm704, %v801
      %834 = vst.msk [vmem:[#allocation2 + $0x8] sm:$0xff] %vm704, %v802
      %835 = vst.msk [vmem:[#allocation2 + $0x10] sm:$0xff] %vm704, %v803
      %836 = vst.msk [vmem:[#allocation2 + $0x18] sm:$0xff] %vm704, %v804
      %837 = vst.msk [vmem:[#allocation2 + $0x20] sm:$0xff] %vm704, %v805
      %838 = vst.msk [vmem:[#allocation2 + $0x28] sm:$0xff] %vm704, %v806
      %839 = vst.msk [vmem:[#allocation2 + $0x30] sm:$0xff] %vm704, %v807
      %840 = vst.msk [vmem:[#allocation2 + $0x38] sm:$0xff] %vm704, %v808
      %841 = vst.msk [vmem:[#allocation2 + $0x40] sm:$0xff] %vm704, %v809
      %842 = vst.msk [vmem:[#allocation2 + $0x48] sm:$0xff] %vm704, %v810
      %843 = vst.msk [vmem:[#allocation2 + $0x50] sm:$0xff] %vm704, %v811
      %844 = vst.msk [vmem:[#allocation2 + $0x58] sm:$0xff] %vm704, %v812
      %845 = vst.msk [vmem:[#allocation2 + $0x60] sm:$0xff] %vm704, %v813
      %846 = vst.msk [vmem:[#allocation2 + $0x68] sm:$0xff] %vm704, %v814
      %847 = vst.msk [vmem:[#allocation2 + $0x70] sm:$0xff] %vm704, %v815
      %848 = vst.msk [vmem:[#allocation2 + $0x78] sm:$0xff] %vm704, %v816
      %849 = vst.msk [vmem:[#allocation2 + $0x80] sm:$0xff] %vm704, %v817
      %850 = vst.msk [vmem:[#allocation2 + $0x88] sm:$0xff] %vm704, %v818
      %851 = vst.msk [vmem:[#allocation2 + $0x90] sm:$0xff] %vm704, %v819
      %852 = vst.msk [vmem:[#allocation2 + $0x98] sm:$0xff] %vm704, %v820
      %853 = vst.msk [vmem:[#allocation2 + $0xa0] sm:$0xff] %vm704, %v821
      %854 = vst.msk [vmem:[#allocation2 + $0xa8] sm:$0xff] %vm704, %v822
      %855 = vst.msk [vmem:[#allocation2 + $0xb0] sm:$0xff] %vm704, %v823
      %856 = vst.msk [vmem:[#allocation2 + $0xb8] sm:$0xff] %vm704, %v824
      %857 = vst.msk [vmem:[#allocation2 + $0xc0] sm:$0xff] %vm704, %v825
      %858 = vst.msk [vmem:[#allocation2 + $0xc8] sm:$0xff] %vm704, %v826
      %859 = vst.msk [vmem:[#allocation2 + $0xd0] sm:$0xff] %vm704, %v827
      %860 = vst.msk [vmem:[#allocation2 + $0xd8] sm:$0xff] %vm704, %v828
      %861 = vst.msk [vmem:[#allocation2 + $0xe0] sm:$0xff] %vm704, %v829
      %862 = vst.msk [vmem:[#allocation2 + $0xe8] sm:$0xff] %vm704, %v830
      %863 = vst.msk [vmem:[#allocation2 + $0xf0] sm:$0xff] %vm704, %v831
      %vm864 = vcmask 522240
      %865 = vst.msk [vmem:[#allocation2 + $0xf8] sm:$0x7f] %vm864, %v832
      %v866 = vld [vmem:[#allocation2] sm:$0xff]
      %v867 = vld [vmem:[#allocation2 + $0x8] sm:$0xff]
      %v868 = vld [vmem:[#allocation2 + $0x10] sm:$0xff]
      %v869 = vld [vmem:[#allocation2 + $0x18] sm:$0xff]
      %v870 = vld [vmem:[#allocation2 + $0x20] sm:$0xff]
      %v871 = vld [vmem:[#allocation2 + $0x28] sm:$0xff]
      %v872 = vld [vmem:[#allocation2 + $0x30] sm:$0xff]
      %v873 = vld [vmem:[#allocation2 + $0x38] sm:$0xff]
      %v874 = vld [vmem:[#allocation2 + $0x40] sm:$0xff]
      %v875 = vld [vmem:[#allocation2 + $0x48] sm:$0xff]
      %v876 = vld [vmem:[#allocation2 + $0x50] sm:$0xff]
      %v877 = vld [vmem:[#allocation2 + $0x58] sm:$0xff]
      %v878 = vld [vmem:[#allocation2 + $0x60] sm:$0xff]
      %v879 = vld [vmem:[#allocation2 + $0x68] sm:$0xff]
      %v880 = vld [vmem:[#allocation2 + $0x70] sm:$0xff]
      %v881 = vld [vmem:[#allocation2 + $0x78] sm:$0xff]
      %v882 = vld [vmem:[#allocation2 + $0x80] sm:$0xff]
      %v883 = vld [vmem:[#allocation2 + $0x88] sm:$0xff]
      %v884 = vld [vmem:[#allocation2 + $0x90] sm:$0xff]
      %v885 = vld [vmem:[#allocation2 + $0x98] sm:$0xff]
      %v886 = vld [vmem:[#allocation2 + $0xa0] sm:$0xff]
      %v887 = vld [vmem:[#allocation2 + $0xa8] sm:$0xff]
      %v888 = vld [vmem:[#allocation2 + $0xb0] sm:$0xff]
      %v889 = vld [vmem:[#allocation2 + $0xb8] sm:$0xff]
      %v890 = vld [vmem:[#allocation2 + $0xc0] sm:$0xff]
      %v891 = vld [vmem:[#allocation2 + $0xc8] sm:$0xff]
      %v892 = vld [vmem:[#allocation2 + $0xd0] sm:$0xff]
      %v893 = vld [vmem:[#allocation2 + $0xd8] sm:$0xff]
      %v894 = vld [vmem:[#allocation2 + $0xe0] sm:$0xff]
      %v895 = vld [vmem:[#allocation2 + $0xe8] sm:$0x7f]
      %v896 = vld [vmem:[#allocation2 + $0xe8] sm:$0xff]
      %v897 = vld [vmem:[#allocation2 + $0xf0] sm:$0xff]
      %v898 = vld [vmem:[#allocation2 + $0xf8] sm:$0x7f]
      %v899 = vmax.f32 %v866, %v868
      %v900 = vmax.f32 %v867, %v869
      %v901 = vmax.f32 %v868, %v870
      %v902 = vmax.f32 %v869, %v871
      %v903 = vmax.f32 %v870, %v872
      %v904 = vmax.f32 %v871, %v873
      %v905 = vmax.f32 %v872, %v874
      %v906 = vmax.f32 %v873, %v875
      %v907 = vmax.f32 %v874, %v876
      %v908 = vmax.f32 %v875, %v877
      %v909 = vmax.f32 %v876, %v878
      %v910 = vmax.f32 %v877, %v879
      %v911 = vmax.f32 %v878, %v880
      %v912 = vmax.f32 %v879, %v881
      %v913 = vmax.f32 %v880, %v882
      %v914 = vmax.f32 %v881, %v883
      %v915 = vmax.f32 %v882, %v884
      %v916 = vmax.f32 %v883, %v885
      %v917 = vmax.f32 %v884, %v886
      %v918 = vmax.f32 %v885, %v887
      %v919 = vmax.f32 %v886, %v888
      %v920 = vmax.f32 %v887, %v889
      %v921 = vmax.f32 %v888, %v890
      %v922 = vmax.f32 %v889, %v891
      %v923 = vmax.f32 %v890, %v892
      %v924 = vmax.f32 %v891, %v893
      %v925 = vmax.f32 %v892, %v894
      %v926 = vmax.f32 %v893, %v896
      %v927 = vmax.f32 %v894, %v897
      %v928 = vmax.f32 %v895, %v898
      %929 = vst.msk [vmem:[#allocation2] sm:$0xff] %vm704, %v899
      %930 = vst.msk [vmem:[#allocation2 + $0x8] sm:$0xff] %vm704, %v900
      %931 = vst.msk [vmem:[#allocation2 + $0x10] sm:$0xff] %vm704, %v901
      %932 = vst.msk [vmem:[#allocation2 + $0x18] sm:$0xff] %vm704, %v902
      %933 = vst.msk [vmem:[#allocation2 + $0x20] sm:$0xff] %vm704, %v903
      %934 = vst.msk [vmem:[#allocation2 + $0x28] sm:$0xff] %vm704, %v904
      %935 = vst.msk [vmem:[#allocation2 + $0x30] sm:$0xff] %vm704, %v905
      %936 = vst.msk [vmem:[#allocation2 + $0x38] sm:$0xff] %vm704, %v906
      %937 = vst.msk [vmem:[#allocation2 + $0x40] sm:$0xff] %vm704, %v907
      %938 = vst.msk [vmem:[#allocation2 + $0x48] sm:$0xff] %vm704, %v908
      %939 = vst.msk [vmem:[#allocation2 + $0x50] sm:$0xff] %vm704, %v909
      %940 = vst.msk [vmem:[#allocation2 + $0x58] sm:$0xff] %vm704, %v910
      %941 = vst.msk [vmem:[#allocation2 + $0x60] sm:$0xff] %vm704, %v911
      %942 = vst.msk [vmem:[#allocation2 + $0x68] sm:$0xff] %vm704, %v912
      %943 = vst.msk [vmem:[#allocation2 + $0x70] sm:$0xff] %vm704, %v913
      %944 = vst.msk [vmem:[#allocation2 + $0x78] sm:$0xff] %vm704, %v914
      %945 = vst.msk [vmem:[#allocation2 + $0x80] sm:$0xff] %vm704, %v915
      %946 = vst.msk [vmem:[#allocation2 + $0x88] sm:$0xff] %vm704, %v916
      %947 = vst.msk [vmem:[#allocation2 + $0x90] sm:$0xff] %vm704, %v917
      %948 = vst.msk [vmem:[#allocation2 + $0x98] sm:$0xff] %vm704, %v918
      %949 = vst.msk [vmem:[#allocation2 + $0xa0] sm:$0xff] %vm704, %v919
      %950 = vst.msk [vmem:[#allocation2 + $0xa8] sm:$0xff] %vm704, %v920
      %951 = vst.msk [vmem:[#allocation2 + $0xb0] sm:$0xff] %vm704, %v921
      %952 = vst.msk [vmem:[#allocation2 + $0xb8] sm:$0xff] %vm704, %v922
      %953 = vst.msk [vmem:[#allocation2 + $0xc0] sm:$0xff] %vm704, %v923
      %954 = vst.msk [vmem:[#allocation2 + $0xc8] sm:$0xff] %vm704, %v924
      %955 = vst.msk [vmem:[#allocation2 + $0xd0] sm:$0xff] %vm704, %v925
      %956 = vst.msk [vmem:[#allocation2 + $0xd8] sm:$0xff] %vm704, %v926
      %957 = vst.msk [vmem:[#allocation2 + $0xe0] sm:$0xff] %vm704, %v927
      %958 = vst.msk [vmem:[#allocation2 + $0xe8] sm:$0x7f] %vm864, %v928
      %v959 = vld [vmem:[#allocation2] ss:$2 sm:$0x7f]
      %s960 = scalar_lea.vmem [#allocation2], 32
      %v961 = vld [vmem:[%s960] ss:$2 sm:$0x7f]
      %s962 = scalar_lea.vmem [#allocation2], 64
      %v963 = vld [vmem:[%s962] ss:$2 sm:$0x7f]
      %s964 = scalar_lea.vmem [#allocation2], 96
      %v965 = vld [vmem:[%s964] ss:$2 sm:$0x7f]
      %s966 = scalar_lea.vmem [#allocation2], 128
      %v967 = vld [vmem:[%s966] ss:$2 sm:$0x7f]
      %s968 = scalar_lea.vmem [#allocation2], 160
      %v969 = vld [vmem:[%s968] ss:$2 sm:$0x7f]
      %s970 = scalar_lea.vmem [#allocation2], 192
      %v971 = vld [vmem:[%s970] ss:$2 sm:$0x7f]
      %v973 = vrot.slane %v961, 1
      %v976 = vrot.slane %v963, 2
      %v979 = vrot.slane %v965, 3
      %v982 = vrot.slane %v967, 4
      %v985 = vrot.slane %v969, 5
      %v988 = vrot.slane %v971, 6
      %vm990 = vcmask 1046528
      %v991 = vsel %vm990, %v959, %v973
      %vm992 = vcmask 1045504
      %v993 = vsel %vm992, %v973, %v976
      %vm994 = vcmask 1044480
      %v995 = vsel %vm994, %v976, %v979
      %v996 = vsel %vm366, %v979, %v982
      %vm997 = vcmask 1042432
      %v998 = vsel %vm997, %v982, %v985
      %vm999 = vcmask 1041408
      %v1000 = vsel %vm999, %v985, %v988
      %1001 = vst.msk [vmem:[%s226] sm:$0xff] %vm704, %v991
      %1002 = vst.msk [vmem:[%s226 + $0x8] sm:$0xff] %vm704, %v993
      %1003 = vst.msk [vmem:[%s226 + $0x10] sm:$0xff] %vm704, %v995
      %1004 = vst.msk [vmem:[%s226 + $0x18] sm:$0xff] %vm704, %v996
      %1005 = vst.msk [vmem:[%s226 + $0x20] sm:$0xff] %vm704, %v998
      %1006 = vst.msk [vmem:[%s226 + $0x28] sm:$0xff] %vm704, %v1000
      %vm1007 = vcmask 516096
      %1008 = vst.msk [vmem:[%s226 + $0x30] sm:$0x1] %vm1007, %v988
      %p1009 = scmp.lt.s32.totalorder %s16, 1
      %s1010 = scalar_select %p1009, %s16, 1
      %s1011 = smul.addr %s1010, 7
      %s1012 = smul.addr %s1011, 8
      %s1013 = scalar_lea.vmem %s5, %s1012
      // Predicated region
      $region41: #{tpu_custom_call.1} parent=39 // pred_check
        %p1014 = pneg %p144
      $region42: #{tpu_custom_call.1} parent=39 // pred_check_branch
        %1016 = sbr.rel (%p1014) target = $region44
      $region43: #{tpu_custom_call.1} parent=39 // pred_region
        _
      $region44: #{tpu_custom_call.1} parent=39 // pred_fallthru
        _
    $region40: #{tpu_custom_call.1} parent=5 // pred_fallthru
      _
    %p1017 = scmp.le.s32.totalorder 2, %s11
    // Predicated region
    $region45: #{tpu_custom_call.1} parent=5 // pred_check
      %p1018 = pneg %p1017
    $region46: #{tpu_custom_call.1} parent=5 // pred_check_branch
      %1020 = sbr.rel (%p1018) target = $region48
    $region47: #{tpu_custom_call.1} parent=5 // pred_region
      %s1021 = ssub.s32 %s11, 2
      // Predicated region
      $region49: #{tpu_custom_call.1} parent=47 // pred_check
        %p1022 = pneg %p150
      $region50: #{tpu_custom_call.1} parent=47 // pred_check_branch
        %1024 = sbr.rel (%p1022) target = $region52
      $region51: #{tpu_custom_call.1} parent=47 // pred_region
        %p1025 = scmp.lt.s32.totalorder %s17, 1
        %s1026 = scalar_select %p1025, %s17, 1
        %s1027 = smul.addr %s1026, 7
        %s1028 = smul.addr %s1027, 8
        %s1029 = scalar_lea.vmem %s5, %s1028
      $region52: #{tpu_custom_call.1} parent=47 // pred_fallthru
        _
    $region48: #{tpu_custom_call.1} parent=5 // pred_fallthru
      _
  $region6: #{tpu_custom_call.1} parent=0 // loop_footer
    %s15 = sadd.s32 1, %s11
  $region7: #{tpu_custom_call.1} parent=0 // loop_footer_branch
    %10 = sbr.rel target = $region3
  $region8: #{tpu_custom_call.1} parent=0 // loop_exit
    _

</llo_original>
